<compile_context>
chip_gen: v7x
topology: tpu7x:2x2x1
jax: 0.10.0
libtpu: 0.0.40
codegen_flags: <defaults>
</compile_context>

<pallas_src>
import functools

import jax
import jax.numpy as jnp
from jax.experimental import pallas as pl
from jax.experimental.pallas import tpu as pltpu


def _round_up(x, m):
    return (x + m - 1) // m * m


# ----------------------------------------------------------------------------
# Fused kernel:  conv-as-GEMM (+bias+ReLU) -> GAP partial sums -> Linear head
#
# grid = (B, HW // tm)      axis 0 "parallel" (megacore), axis 1 "arbitrary"
#   p_ref   : [tm, KP]   bf16   im2col patch tile of image b
#   wc_ref  : [KP, CfP]  bf16   conv weight (grid-resident)
#   bc_ref  : [1,  CfP]  f32    conv bias
#   wf_ref  : [CfP, NP]  bf16   classifier weight (grid-resident)
#   bf_ref  : [1,  NP]   f32    classifier bias
#   o_ref   : [1,  NP]   f32    logits row of image b (written on last tile)
#   acc_ref : [1,  CfP]  f32    running per-image channel sums (VMEM scratch)
# ----------------------------------------------------------------------------
def _fused_stem_gap_fc_kernel(p_ref, wc_ref, bc_ref, wf_ref, bf_ref,
                              o_ref, acc_ref, *, inv_hw):
    m = pl.program_id(1)

    @pl.when(m == 0)
    def _():
        acc_ref[...] = jnp.zeros_like(acc_ref)

    # 3x3-conv-as-GEMM on the MXU (bf16 operands, f32 accumulation) + bias + ReLU.
    feat = jnp.dot(p_ref[...], wc_ref[...],
                   preferred_element_type=jnp.float32)          # [tm, CfP]
    feat = jnp.maximum(feat + bc_ref[...], 0.0)

    # Global-average-pool partial sums (feature map never touches HBM).
    acc_ref[...] += jnp.sum(feat, axis=0, keepdims=True)        # [1, CfP]

    # Epilogue on this image's last spatial tile: scale by 1/HW, then the
    # replaced classifier head  Linear(out_features -> n_classes, bias=True).
    @pl.when(m == pl.num_programs(1) - 1)
    def _():
        pooled = (acc_ref[...] * inv_hw).astype(jnp.bfloat16)   # [1, CfP]
        logits = jnp.dot(pooled, wf_ref[...],
                         preferred_element_type=jnp.float32)    # [1, NP]
        o_ref[...] = logits + bf_ref[...]


def _fused_forward(patches, w_conv, b_conv, w_fc, b_fc, *, tm):
    B, HW, KP = patches.shape
    CfP = w_conv.shape[1]
    NP = w_fc.shape[1]
    n_m = HW // tm

    kernel = functools.partial(_fused_stem_gap_fc_kernel, inv_hw=1.0 / HW)

    flops = 2 * B * HW * KP * CfP + 2 * B * CfP * NP
    bytes_accessed = (B * HW * KP * 2                 # patches (bf16)
                      + KP * CfP * 2 + CfP * NP * 2   # weights (bf16)
                      + (CfP + NP) * 4                # biases (f32)
                      + B * NP * 4)                   # logits (f32)

    out = pl.pallas_call(
        kernel,
        out_shape=jax.ShapeDtypeStruct((B, 1, NP), jnp.float32),
        grid_spec=pltpu.PrefetchScalarGridSpec(
            num_scalar_prefetch=0,
            grid=(B, n_m),
            in_specs=[
                pl.BlockSpec((None, tm, KP), lambda b, m: (b, m, 0)),
                pl.BlockSpec((KP, CfP), lambda b, m: (0, 0)),
                pl.BlockSpec((1, CfP), lambda b, m: (0, 0)),
                pl.BlockSpec((CfP, NP), lambda b, m: (0, 0)),
                pl.BlockSpec((1, NP), lambda b, m: (0, 0)),
            ],
            out_specs=pl.BlockSpec((None, 1, NP), lambda b, m: (b, 0, 0)),
            scratch_shapes=[pltpu.VMEM((1, CfP), jnp.float32)],
        ),
        compiler_params=pltpu.CompilerParams(
            dimension_semantics=("parallel", "arbitrary"),
            vmem_limit_bytes=32 * 1024 * 1024,
        ),
        cost_estimate=pl.CostEstimate(flops=flops, transcendentals=0,
                                      bytes_accessed=bytes_accessed),
    )(patches, w_conv, b_conv, w_fc, b_fc)
    return out.reshape(B, NP)


# ----------------------------------------------------------------------------
# Glue: im2col (3x3, stride 1, pad 1) in plain JAX
# ----------------------------------------------------------------------------
def im2col_3x3(x_nhwc):
    """3x3 / stride 1 / pad 1 im2col; (kh, kw, Cin)-minor ordering."""
    B, H, W, C = x_nhwc.shape
    xp = jnp.pad(x_nhwc, ((0, 0), (1, 1), (1, 1), (0, 0)))
    cols = []
    for i in range(3):
        for j in range(3):
            cols.append(xp[:, i:i + H, j:j + W, :])
    patches = jnp.concatenate(cols, axis=-1)             # [B, H, W, 9*C]
    return patches.reshape(B, H * W, 9 * C)


# ----------------------------------------------------------------------------
# MyModel forward
# ----------------------------------------------------------------------------
@functools.partial(jax.jit, static_argnames=("block_hw",))
def my_model_forward(x_nchw, params, block_hw=128):
    B, Cin, H, W = x_nchw.shape
    HW = H * W

    x_nhwc = jnp.transpose(x_nchw, (0, 2, 3, 1))          # NCHW -> NHWC
    # TODO(synk): im2col is still materialized in HBM (9x the input bytes);
    # folding the 9 taps inside the kernel needs overlapping halo windows that
    # BlockSpec cannot express cleanly, so it stays in the wrapper.
    patches = im2col_3x3(x_nhwc)                          # [B, HW, 9*Cin] f32
    K = patches.shape[-1]

    w_conv, b_conv = params["w_conv"], params["b_conv"]   # [K, Cf], [Cf]
    w_fc, b_fc = params["w_fc"], params["b_fc"]           # [Cf, n_classes], [n_classes]
    Cf, n_classes = w_fc.shape

    # Pad to MXU/lane-friendly sizes: Cf and n_classes -> multiples of 128
    # (lane-dense unmasked stores), K -> multiple of 8 (sublane aligned).
    KP = _round_up(K, 8)
    CfP = _round_up(Cf, 128)
    NP = _round_up(n_classes, 128)

    patches_p = jnp.pad(patches, ((0, 0), (0, 0), (0, KP - K))).astype(jnp.bfloat16)
    w_conv_p = jnp.pad(w_conv, ((0, KP - K), (0, CfP - Cf))).astype(jnp.bfloat16)
    b_conv_p = jnp.pad(b_conv, (0, CfP - Cf)).reshape(1, CfP).astype(jnp.float32)
    w_fc_p = jnp.pad(w_fc, ((0, CfP - Cf), (0, NP - n_classes))).astype(jnp.bfloat16)
    b_fc_p = jnp.pad(b_fc, (0, NP - n_classes)).reshape(1, NP).astype(jnp.float32)

    # Spatial tile: largest power-of-two divisor of HW up to block_hw.
    # (Raise block_hw toward 512-1024 on v6e's 128 MiB VMEM; keep modest on
    #  v7x's 64 MiB and on v5e.)
    tm = block_hw
    while tm > 8 and HW % tm != 0:
        tm //= 2
    if HW % tm != 0:
        tm = HW                                           # single tile per image

    logits_padded = _fused_forward(patches_p, w_conv_p, b_conv_p,
                                   w_fc_p, b_fc_p, tm=tm)
    return logits_padded[:, :n_classes]


def init_params(key, in_channels, out_features, n_classes):
    k1, k2, k3 = jax.random.split(key, 3)
    kdim = 9 * in_channels
    # stand-in conv stem (Kaiming-ish); weight layout [kh*kw*Cin, Cout]
    w_conv = jax.random.normal(k1, (kdim, out_features), jnp.float32) * (
        2.0 / kdim) ** 0.5
    b_conv = jnp.zeros((out_features,), jnp.float32)
    # replaced classifier head: nn.Linear(out_features, n_classes, bias=True)
    bound = 1.0 / (out_features ** 0.5)
    w_fc = jax.random.uniform(k2, (out_features, n_classes), jnp.float32,
                              -bound, bound)
    b_fc = jax.random.uniform(k3, (n_classes,), jnp.float32, -bound, bound)
    return {"w_conv": w_conv, "b_conv": b_conv, "w_fc": w_fc, "b_fc": b_fc}


def reference_forward(x_nchw, params):
    """Pure-JAX f32 reference for correctness checking."""
    x_nhwc = jnp.transpose(x_nchw, (0, 2, 3, 1))
    patches = im2col_3x3(x_nhwc)
    feat = jnp.maximum(
        jnp.einsum("bmk,kc->bmc", patches, params["w_conv"]) + params["b_conv"],
        0.0)
    pooled = jnp.mean(feat, axis=1)
    return pooled @ params["w_fc"] + params["b_fc"]


if __name__ == "__main__":
    key = jax.random.PRNGKey(0)
    kx, kp = jax.random.split(key)

    B, Cin, H, W = 2, 4, 16, 16       # small image batch
    out_features = 64                 # stand-in backbone feature dim
    n_classes = 10

    x = jax.random.normal(kx, (B, Cin, H, W), jnp.float32)
    params = init_params(kp, Cin, out_features, n_classes)

    logits = my_model_forward(x, params)
    jax.block_until_ready(logits)
    assert logits.shape == (B, n_classes)

    ref = reference_forward(x, params)
    max_err = float(jnp.max(jnp.abs(logits - ref)))
    assert max_err < 1e-1, f"mismatch vs pure-JAX reference: max_err={max_err}"

    print("KERNEL_OK")
</pallas_src>

<mosaic_0001>
module attributes {stable_mosaic.version = 11 : i64} {
  func.func @_fused_stem_gap_fc_kernel(%arg0: i32, %arg1: i32, %arg2: memref<1x128x40xbf16, #tpu.memory_space<vmem>>, %arg3: memref<40x128xbf16, #tpu.memory_space<vmem>>, %arg4: memref<1x128xf32, #tpu.memory_space<vmem>>, %arg5: memref<128x128xbf16, #tpu.memory_space<vmem>>, %arg6: memref<1x128xf32, #tpu.memory_space<vmem>>, %arg7: memref<1x1x128xf32, #tpu.memory_space<vmem>>, %arg8: memref<1x128xf32, #tpu.memory_space<vmem>>) attributes {dimension_semantics = [#tpu.dimension_semantics<parallel>, #tpu.dimension_semantics<arbitrary>], iteration_bounds = array<i64: 2, 2>, scalar_prefetch = 0 : i64, scratch_operands = 1 : i64, tpu.core_type = #tpu.core_type<tc>, window_params = [{transform_indices = @transform_0, window_bounds = array<i64: 1, 128, 40>}, {pipeline_mode = #tpu.pipeline_mode<synchronous>, transform_indices = @transform_1, window_bounds = array<i64: 40, 128>}, {pipeline_mode = #tpu.pipeline_mode<synchronous>, transform_indices = @transform_2, window_bounds = array<i64: 1, 128>}, {pipeline_mode = #tpu.pipeline_mode<synchronous>, transform_indices = @transform_3, window_bounds = array<i64: 128, 128>}, {pipeline_mode = #tpu.pipeline_mode<synchronous>, transform_indices = @transform_4, window_bounds = array<i64: 1, 128>}, {transform_indices = @transform_5, window_bounds = array<i64: 1, 1, 128>}]} {
    %c0_i32 = arith.constant 0 : i32
    %0 = arith.cmpi eq, %arg1, %c0_i32 : i32
    %1 = arith.extui %0 : i1 to i32
    %c0_i32_0 = arith.constant 0 : i32
    %2 = arith.cmpi ne, %1, %c0_i32_0 : i32
    scf.if %2 {
      %cst_14 = arith.constant 0.000000e+00 : f32
      %20 = vector.broadcast %cst_14 : f32 to vector<1x128xf32>
      %c0_15 = arith.constant 0 : index
      %c0_16 = arith.constant 0 : index
      %21 = vector.load %arg8[%c0_15, %c0_16] : memref<1x128xf32, #tpu.memory_space<vmem>>, vector<1x128xf32>
      tpu.vector_store %arg8[%c0_15, %c0_16], %20 {strides = array<i32>} : memref<1x128xf32, #tpu.memory_space<vmem>>, vector<1x128xf32>,
    } else {
    }
    %c0 = arith.constant 0 : index
    %c0_1 = arith.constant 0 : index
    %c0_2 = arith.constant 0 : index
    %3 = vector.load %arg2[%c0, %c0_1, %c0_2] : memref<1x128x40xbf16, #tpu.memory_space<vmem>>, vector<1x128x40xbf16>
    %4 = vector.shape_cast %3 : vector<1x128x40xbf16> to vector<128x40xbf16>
    %c0_3 = arith.constant 0 : index
    %c0_4 = arith.constant 0 : index
    %5 = vector.load %arg3[%c0_3, %c0_4] : memref<40x128xbf16, #tpu.memory_space<vmem>>, vector<40x128xbf16>
    %cst = arith.constant dense<0.000000e+00> : vector<128x128xf32>
    %6 = tpu.matmul %4, %5, %cst {dimension_numbers = #tpu.dot_dimension_numbers<[1], [0], [0], [1], [0, 0, 1, 1], [], []>} : vector<128x40xbf16>, vector<40x128xbf16>, vector<128x128xf32> -> vector<128x128xf32>
    %c0_5 = arith.constant 0 : index
    %c0_6 = arith.constant 0 : index
    %7 = vector.load %arg4[%c0_5, %c0_6] : memref<1x128xf32, #tpu.memory_space<vmem>>, vector<1x128xf32>
    %8 = vector.broadcast %7 : vector<1x128xf32> to vector<128x128xf32>
    %9 = arith.addf %6, %8 : vector<128x128xf32>
    %cst_7 = arith.constant 0.000000e+00 : f32
    %10 = vector.broadcast %cst_7 : f32 to vector<128x128xf32>
    %11 = arith.maximumf %9, %10 : vector<128x128xf32>
    %c0_8 = arith.constant 0 : index
    %c0_9 = arith.constant 0 : index
    %12 = vector.load %arg8[%c0_8, %c0_9] : memref<1x128xf32, #tpu.memory_space<vmem>>, vector<1x128xf32>
    %cst_10 = arith.constant dense<0.000000e+00> : vector<128xf32>
    %13 = vector.multi_reduction <add>, %11, %cst_10 [0] : vector<128x128xf32> to vector<128xf32>
    %14 = vector.shape_cast %13 : vector<128xf32> to vector<1x128xf32>
    %15 = arith.addf %12, %14 : vector<1x128xf32>
    %c0_11 = arith.constant 0 : index
    %c0_12 = arith.constant 0 : index
    %16 = vector.load %arg8[%c0_11, %c0_12] : memref<1x128xf32, #tpu.memory_space<vmem>>, vector<1x128xf32>
    tpu.vector_store %arg8[%c0_11, %c0_12], %15 {strides = array<i32>} : memref<1x128xf32, #tpu.memory_space<vmem>>, vector<1x128xf32>,
    %c1_i32 = arith.constant 1 : i32
    %17 = arith.cmpi eq, %arg1, %c1_i32 : i32
    %18 = arith.extui %17 : i1 to i32
    %c0_i32_13 = arith.constant 0 : i32
    %19 = arith.cmpi ne, %18, %c0_i32_13 : i32
    scf.if %19 {
      %c0_14 = arith.constant 0 : index
      %c0_15 = arith.constant 0 : index
      %20 = vector.load %arg8[%c0_14, %c0_15] : memref<1x128xf32, #tpu.memory_space<vmem>>, vector<1x128xf32>
      %cst_16 = arith.constant 3.906250e-03 : f32
      %21 = vector.broadcast %cst_16 : f32 to vector<1x128xf32>
      %22 = arith.mulf %20, %21 : vector<1x128xf32>
      %23 = arith.truncf %22 : vector<1x128xf32> to vector<1x128xbf16>
      %c0_17 = arith.constant 0 : index
      %c0_18 = arith.constant 0 : index
      %24 = vector.load %arg5[%c0_17, %c0_18] : memref<128x128xbf16, #tpu.memory_space<vmem>>, vector<128x128xbf16>
      %cst_19 = arith.constant dense<0.000000e+00> : vector<1x128xf32>
      %25 = tpu.matmul %23, %24, %cst_19 {dimension_numbers = #tpu.dot_dimension_numbers<[1], [0], [0], [1], [0, 0, 1, 1], [], []>} : vector<1x128xbf16>, vector<128x128xbf16>, vector<1x128xf32> -> vector<1x128xf32>
      %c0_20 = arith.constant 0 : index
      %c0_21 = arith.constant 0 : index
      %26 = vector.load %arg6[%c0_20, %c0_21] : memref<1x128xf32, #tpu.memory_space<vmem>>, vector<1x128xf32>
      %27 = arith.addf %25, %26 : vector<1x128xf32>
      %c0_22 = arith.constant 0 : index
      %c0_23 = arith.constant 0 : index
      %c0_24 = arith.constant 0 : index
      %28 = vector.load %arg7[%c0_22, %c0_23, %c0_24] : memref<1x1x128xf32, #tpu.memory_space<vmem>>, vector<1x1x128xf32>
      %29 = vector.shape_cast %28 : vector<1x1x128xf32> to vector<1x128xf32>
      %30 = vector.shape_cast %27 : vector<1x128xf32> to vector<1x1x128xf32>
      tpu.vector_store %arg7[%c0_22, %c0_23, %c0_24], %30 {strides = array<i32>} : memref<1x1x128xf32, #tpu.memory_space<vmem>>, vector<1x1x128xf32>,
    } else {
    }
    return
  }
  func.func @transform_0(%arg0: i32, %arg1: i32) -> (i32, i32, i32) {
    %c0_i32 = arith.constant 0 : i32
    %c0_i32_0 = arith.constant 0 : i32
    return %arg0, %arg1, %c0_i32 : i32, i32, i32
  }
  func.func @transform_1(%arg0: i32, %arg1: i32) -> (i32, i32) {
    %c0_i32 = arith.constant 0 : i32
    %c0_i32_0 = arith.constant 0 : i32
    %c0_i32_1 = arith.constant 0 : i32
    return %c0_i32, %c0_i32_0 : i32, i32
  }
  func.func @transform_2(%arg0: i32, %arg1: i32) -> (i32, i32) {
    %c0_i32 = arith.constant 0 : i32
    %c0_i32_0 = arith.constant 0 : i32
    %c0_i32_1 = arith.constant 0 : i32
    return %c0_i32, %c0_i32_0 : i32, i32
  }
  func.func @transform_3(%arg0: i32, %arg1: i32) -> (i32, i32) {
    %c0_i32 = arith.constant 0 : i32
    %c0_i32_0 = arith.constant 0 : i32
    %c0_i32_1 = arith.constant 0 : i32
    return %c0_i32, %c0_i32_0 : i32, i32
  }
  func.func @transform_4(%arg0: i32, %arg1: i32) -> (i32, i32) {
    %c0_i32 = arith.constant 0 : i32
    %c0_i32_0 = arith.constant 0 : i32
    %c0_i32_1 = arith.constant 0 : i32
    return %c0_i32, %c0_i32_0 : i32, i32
  }
  func.func @transform_5(%arg0: i32, %arg1: i32) -> (i32, i32, i32) {
    %c0_i32 = arith.constant 0 : i32
    %c0_i32_0 = arith.constant 0 : i32
    %c0_i32_1 = arith.constant 0 : i32
    return %arg0, %c0_i32, %c0_i32_0 : i32, i32, i32
  }
}

</mosaic_0001>

<llo_original>
// kernel: my_model_forward.1
$region0: #{my_model_forward.1}
  #allocation0 [shape = 'u32[]', space=smem, size = 0x4, offset = 0x4, fixed_abs, tag = 'smem constant byte address 0x4 - core index']
  #allocation1 [shape = 'u32[144,128]{1,0:T(1,128)}', space=vmem, size = 0x12000, scoped, tag = 'internal scratch']
  #allocation2 [shape = 'f32[1,128]{1,0:T(1,128)}', space=vmem, size = 0x200, scoped, tag = 'scratch operand']
  %s0 = inlined_call_operand.vmem [shape: bf16[2,256,40], index: 0, kind: input, shape index: {}]
  %s1 = inlined_call_operand.vmem [shape: bf16[40,128], index: 1, kind: input, shape index: {}]
  %s2 = inlined_call_operand.vmem [shape: f32[1,128], index: 2, kind: input, shape index: {}]
  %s3 = inlined_call_operand.vmem [shape: bf16[128,128], index: 3, kind: input, shape index: {}]
  %s4 = inlined_call_operand.vmem [shape: f32[1,128], index: 4, kind: input, shape index: {}]
  %s5 = inlined_call_operand.hbm [shape: f32[2,1,128], index: 5, kind: output, shape index: {}]
  %s6 = sld [smem:[#allocation0]]
  $region61: #{my_model_forward.1} parent=0
    _
  %s8 = ssub.s32 1, %s6
  %s9 = scalar_select 0, %s8, %s6
  $region1: #{my_model_forward.1} parent=0
    #allocation3 [shape = 'u8[1024]{0}', space=vmem, size = 0x400, scoped, tag = 'output window, operand 0']
    #allocation4 [shape = 's32[2]{0}', space=sflag, size = 0x8, scoped, tag = 'scoped memory for my_model_forward.1']
    %10 = vsyncpa [#allocation4], 0
    %s11 = scalar_lea.sflag [#allocation4], 1
    %12 = vsyncpa %s11, 0
    loop: start=0, step=1, limit=6
    $region2: #{my_model_forward.1} parent=1 // loop_pre_header
      _
    $region3: #{my_model_forward.1} parent=1 // loop_header
      %s14 = sphi 0, %s18
      %p15 = scmp.ge.s32.totalorder %s14, 6
      %s21 = sphi 0, %s33
      %s22 = sphi 0, %s29
      %s23 = sphi 0, %s21
      %s24 = sphi 0, %s22
      %s25 = sphi 0, %s23
      %s26 = sphi 0, %s24
      %s38 = sphi 0, %s40
      %s41 = sphi 0, %s38
      %s42 = sphi 0, %s41
      %s58 = sphi 0, %s42
      %s62 = sphi 0, %s62
      %s64 = sphi 0, %s62
      %s65 = sphi 0, %s64
      %s79 = sphi 0, %s65
      %s83 = sphi 0, %s83
      %s85 = sphi 0, %s83
      %s86 = sphi 0, %s85
      %s100 = sphi 0, %s86
      %s104 = sphi 0, %s104
      %s106 = sphi 0, %s104
      %s107 = sphi 0, %s106
      %s121 = sphi 0, %s107
      %s125 = sphi 0, %s125
      %s127 = sphi 0, %s125
      %s128 = sphi 0, %s127
      %s142 = sphi 0, %s128
      %s148 = sphi 0, %s150
      %s151 = sphi 0, %s148
      %s152 = sphi 0, %s151
      %s168 = sphi 0, %s152
    $region4: #{my_model_forward.1} parent=1 // loop_header_branch
      %17 = sbr.rel (%p15) target = $region8
    $region5: #{my_model_forward.1} parent=1 // loop_body
      %s19 = ssub.s32 %s14, 1
      %s20 = ssub.s32 %s14, 2
      %s27 = sadd.s32 1, %s22
      %p28 = scmp.ge.s32.totalorder %s27, 2
      %s29 = scalar_select %p28, 0, %s27
      %s30 = sadd.s32 1, %s21
      %s31 = scalar_select %p28, %s30, %s21
      %p32 = scmp.ge.s32.totalorder %s31, 2
      %s33 = scalar_select %p32, 0, %s31
      %s34 = ssub.s32 %s21, %s33
      %s35 = ssub.s32 %s22, %s29
      %s36 = sor.u32 %s34, %s35
      %p37 = scmp.eq.s32.totalorder %s36, 0
      %s39 = sadd.s32 %s38, 1
      %s40 = scalar_select %p37, %s38, %s39
      %p43 = pneg %p37
      %p44 = scmp.eq.s32.totalorder %s14, 3
      %p45 = por %p43, %p44
      %p46 = scmp.ne.s32.totalorder %s38, %s41
      %p47 = scmp.eq.s32.totalorder %s14, 0
      %p48 = por %p46, %p47
      %p49 = scmp.ne.s32.totalorder %s38, %s41
      %p50 = scmp.eq.s32.totalorder %s19, 3
      %p51 = por %p49, %p50
      %p52 = scmp.ne.s32.totalorder %s41, %s42
      %p53 = scmp.eq.s32.totalorder %s19, 0
      %p54 = por %p52, %p53
      %p55 = scmp.ne.s32.totalorder %s41, %s42
      %p56 = scmp.eq.s32.totalorder %s20, 3
      %p57 = por %p55, %p56
      %p59 = scmp.ne.s32.totalorder %s42, %s58
      %p60 = scmp.eq.s32.totalorder %s20, 0
      %p61 = por %p59, %p60
      %s63 = sadd.s32 %s62, 1
      %p66 = scmp.eq.s32.totalorder %s14, 3
      %p67 = scmp.ne.s32.totalorder %s62, %s64
      %p68 = scmp.eq.s32.totalorder %s14, 0
      %p69 = por %p67, %p68
      %p70 = scmp.ne.s32.totalorder %s62, %s64
      %p71 = scmp.eq.s32.totalorder %s19, 3
      %p72 = por %p70, %p71
      %p73 = scmp.ne.s32.totalorder %s64, %s65
      %p74 = scmp.eq.s32.totalorder %s19, 0
      %p75 = por %p73, %p74
      %p76 = scmp.ne.s32.totalorder %s64, %s65
      %p77 = scmp.eq.s32.totalorder %s20, 3
      %p78 = por %p76, %p77
      %p80 = scmp.ne.s32.totalorder %s65, %s79
      %p81 = scmp.eq.s32.totalorder %s20, 0
      %p82 = por %p80, %p81
      %s84 = sadd.s32 %s83, 1
      %p87 = scmp.eq.s32.totalorder %s14, 3
      %p88 = scmp.ne.s32.totalorder %s83, %s85
      %p89 = scmp.eq.s32.totalorder %s14, 0
      %p90 = por %p88, %p89
      %p91 = scmp.ne.s32.totalorder %s83, %s85
      %p92 = scmp.eq.s32.totalorder %s19, 3
      %p93 = por %p91, %p92
      %p94 = scmp.ne.s32.totalorder %s85, %s86
      %p95 = scmp.eq.s32.totalorder %s19, 0
      %p96 = por %p94, %p95
      %p97 = scmp.ne.s32.totalorder %s85, %s86
      %p98 = scmp.eq.s32.totalorder %s20, 3
      %p99 = por %p97, %p98
      %p101 = scmp.ne.s32.totalorder %s86, %s100
      %p102 = scmp.eq.s32.totalorder %s20, 0
      %p103 = por %p101, %p102
      %s105 = sadd.s32 %s104, 1
      %p108 = scmp.eq.s32.totalorder %s14, 3
      %p109 = scmp.ne.s32.totalorder %s104, %s106
      %p110 = scmp.eq.s32.totalorder %s14, 0
      %p111 = por %p109, %p110
      %p112 = scmp.ne.s32.totalorder %s104, %s106
      %p113 = scmp.eq.s32.totalorder %s19, 3
      %p114 = por %p112, %p113
      %p115 = scmp.ne.s32.totalorder %s106, %s107
      %p116 = scmp.eq.s32.totalorder %s19, 0
      %p117 = por %p115, %p116
      %p118 = scmp.ne.s32.totalorder %s106, %s107
      %p119 = scmp.eq.s32.totalorder %s20, 3
      %p120 = por %p118, %p119
      %p122 = scmp.ne.s32.totalorder %s107, %s121
      %p123 = scmp.eq.s32.totalorder %s20, 0
      %p124 = por %p122, %p123
      %s126 = sadd.s32 %s125, 1
      %p129 = scmp.eq.s32.totalorder %s14, 3
      %p130 = scmp.ne.s32.totalorder %s125, %s127
      %p131 = scmp.eq.s32.totalorder %s14, 0
      %p132 = por %p130, %p131
      %p133 = scmp.ne.s32.totalorder %s125, %s127
      %p134 = scmp.eq.s32.totalorder %s19, 3
      %p135 = por %p133, %p134
      %p136 = scmp.ne.s32.totalorder %s127, %s128
      %p137 = scmp.eq.s32.totalorder %s19, 0
      %p138 = por %p136, %p137
      %p139 = scmp.ne.s32.totalorder %s127, %s128
      %p140 = scmp.eq.s32.totalorder %s20, 3
      %p141 = por %p139, %p140
      %p143 = scmp.ne.s32.totalorder %s128, %s142
      %p144 = scmp.eq.s32.totalorder %s20, 0
      %p145 = por %p143, %p144
      %s146 = ssub.s32 %s21, %s33
      %p147 = scmp.eq.s32.totalorder %s146, 0
      %s149 = sadd.s32 %s148, 1
      %s150 = scalar_select %p147, %s148, %s149
      %p153 = pneg %p147
      %p154 = scmp.eq.s32.totalorder %s14, 3
      %p155 = por %p153, %p154
      %p156 = scmp.ne.s32.totalorder %s148, %s151
      %p157 = scmp.eq.s32.totalorder %s14, 0
      %p158 = por %p156, %p157
      %p159 = scmp.ne.s32.totalorder %s148, %s151
      %p160 = scmp.eq.s32.totalorder %s19, 3
      %p161 = por %p159, %p160
      %p162 = scmp.ne.s32.totalorder %s151, %s152
      %p163 = scmp.eq.s32.totalorder %s19, 0
      %p164 = por %p162, %p163
      %p165 = scmp.ne.s32.totalorder %s151, %s152
      %p166 = scmp.eq.s32.totalorder %s20, 3
      %p167 = por %p165, %p166
      %p169 = scmp.ne.s32.totalorder %s152, %s168
      %p170 = scmp.eq.s32.totalorder %s20, 0
      %p171 = por %p169, %p170
      %p172 = scmp.le.s32.totalorder 1, %s14
      %p173 = scmp.lt.s32.totalorder %s14, 5
      %p174 = pnand %p172, %p173
      %p175 = pneg %p174
      // Predicated region
      $region9: #{my_model_forward.1} parent=5 // pred_check
        _
      $region10: #{my_model_forward.1} parent=5 // pred_check_branch
        %177 = sbr.rel (%p174) target = $region12
      $region11: #{my_model_forward.1} parent=5 // pred_region
        %s178 = ssub.s32 %s14, 1
        // Predicated region
        $region13: #{my_model_forward.1} parent=11 // pred_check
          %p179 = pneg %p75
        $region14: #{my_model_forward.1} parent=11 // pred_check_branch
          %181 = sbr.rel (%p179) target = $region16
        $region15: #{my_model_forward.1} parent=11 // pred_region
          _
        $region16: #{my_model_forward.1} parent=11 // pred_fallthru
          _
        // Predicated region
        $region17: #{my_model_forward.1} parent=11 // pred_check
          %p182 = pneg %p96
        $region18: #{my_model_forward.1} parent=11 // pred_check_branch
          %184 = sbr.rel (%p182) target = $region20
        $region19: #{my_model_forward.1} parent=11 // pred_region
          _
        $region20: #{my_model_forward.1} parent=11 // pred_fallthru
          _
        // Predicated region
        $region21: #{my_model_forward.1} parent=11 // pred_check
          %p185 = pneg %p117
        $region22: #{my_model_forward.1} parent=11 // pred_check_branch
          %187 = sbr.rel (%p185) target = $region24
        $region23: #{my_model_forward.1} parent=11 // pred_region
          _
        $region24: #{my_model_forward.1} parent=11 // pred_fallthru
          _
        // Predicated region
        $region25: #{my_model_forward.1} parent=11 // pred_check
          %p188 = pneg %p138
        $region26: #{my_model_forward.1} parent=11 // pred_check_branch
          %190 = sbr.rel (%p188) target = $region28
        $region27: #{my_model_forward.1} parent=11 // pred_region
          _
        $region28: #{my_model_forward.1} parent=11 // pred_fallthru
          _
      $region12: #{my_model_forward.1} parent=5 // pred_fallthru
        _
      %p191 = scmp.lt.s32.totalorder %s14, 4
      // Predicated region
      $region29: #{my_model_forward.1} parent=5 // pred_check
        %p192 = pneg %p191
      $region30: #{my_model_forward.1} parent=5 // pred_check_branch
        %194 = sbr.rel (%p192) target = $region32
      $region31: #{my_model_forward.1} parent=5 // pred_region
        // Predicated region
        $region33: #{my_model_forward.1} parent=31 // pred_check
          %p195 = pneg %p48
        $region34: #{my_model_forward.1} parent=31 // pred_check_branch
          %197 = sbr.rel (%p195) target = $region36
        $region35: #{my_model_forward.1} parent=31 // pred_region
          %s198 = smul.u32 16, %s22
          %p199 = scmp.lt.s32.totalorder %s21, 1
          %s200 = scalar_select %p199, %s21, 1
          %p201 = scmp.lt.s32.totalorder %s198, 31
          %s202 = scalar_select %p201, %s198, 31
          %s203 = smul.addr %s200, 32
          %s204 = sadd.s32 %s202, %s203
          %s205 = smul.addr %s204, 4
          %s206 = scalar_lea.vmem %s0, %s205
          %s207 = smul.u32 16, %s22
        $region36: #{my_model_forward.1} parent=31 // pred_fallthru
          _
      $region32: #{my_model_forward.1} parent=5 // pred_fallthru
        _
      %p208 = scmp.le.s32.totalorder 1, %s14
      %p209 = scmp.lt.s32.totalorder %s14, 5
      %p210 = pnand %p208, %p209
      %p211 = pneg %p210
      // Predicated region
      $region37: #{my_model_forward.1} parent=5 // pred_check
        _
      $region38: #{my_model_forward.1} parent=5 // pred_check_branch
        %213 = sbr.rel (%p210) target = $region40
      $region39: #{my_model_forward.1} parent=5 // pred_region
        %s214 = ssub.s32 %s14, 1
        %s215 = smul.u32 16, %s24
        %p216 = scmp.lt.s32.totalorder %s23, 1
        %s217 = scalar_select %p216, %s23, 1
        %p218 = scmp.lt.s32.totalorder %s215, 31
        %s219 = scalar_select %p218, %s215, 31
        %s220 = smul.addr %s217, 32
        %s221 = sadd.s32 %s219, %s220
        %s222 = smul.addr %s221, 4
        %s223 = scalar_lea.vmem %s0, %s222
        %p224 = pneg %p54
        %p225 = pneg %p51
        %p226 = pneg %p75
        %p227 = pneg %p72
        %p228 = pneg %p96
        %p229 = pneg %p93
        %p230 = pneg %p117
        %p231 = pneg %p114
        %p232 = pneg %p138
        %p233 = pneg %p135
        %p234 = pneg %p164
        %p235 = pneg %p161
        %s236 = sand.u32 %s151, 1
        %s237 = scalar_lea.sflag [#allocation4], %s236
        %s238 = sand.u32 %s151, 1
        %s239 = scalar_lea.vmem [#allocation3], %s238
        %s240 = smul.u32 16, %s24
        %p241 = scmp.lt.s32.totalorder %s23, 1
        %s242 = scalar_select %p241, %s23, 1
        %p243 = scmp.lt.s32.totalorder %s240, 31
        %s244 = scalar_select %p243, %s240, 31
        %s245 = smul.addr %s242, 32
        %s246 = sadd.s32 %s244, %s245
        %s247 = smul.addr %s246, 4
        %s248 = scalar_lea.vmem %s0, %s247
        %s249 = smul.u32 16, %s24
        %p251 = scmp.eq.s32.totalorder %s24, 0
        // Predicated region
        $region41: #{my_model_forward.1} parent=39 // pred_check
          %p252 = pneg %p251
        $region42: #{my_model_forward.1} parent=39 // pred_check_branch
          %254 = sbr.rel (%p252) target = $region44
        $region43: #{my_model_forward.1} parent=39 // pred_region
          %255 = vst [vmem:[#allocation2] sm:$0x1] 0.0
        $region44: #{my_model_forward.1} parent=39 // pred_fallthru
          _
        %v256 = vld [vmem:[%s248] sm:$0xf]
        %v257 = vld [vmem:[%s248 + $0x4] sm:$0xf]
        %v258 = vld [vmem:[%s248 + $0x8] sm:$0xf]
        %v259 = vld [vmem:[%s248 + $0xc] sm:$0xf]
        %v260 = vld [vmem:[%s248 + $0x10] sm:$0xf]
        %v261 = vld [vmem:[%s248 + $0x14] sm:$0xf]
        %v262 = vld [vmem:[%s248 + $0x18] sm:$0xf]
        %v263 = vld [vmem:[%s248 + $0x1c] sm:$0xf]
        %v264 = vld [vmem:[%s248 + $0x20] sm:$0xf]
        %v265 = vld [vmem:[%s248 + $0x24] sm:$0xf]
        %v266 = vld [vmem:[%s248 + $0x28] sm:$0xf]
        %v267 = vld [vmem:[%s248 + $0x2c] sm:$0xf]
        %v268 = vld [vmem:[%s248 + $0x30] sm:$0xf]
        %v269 = vld [vmem:[%s248 + $0x34] sm:$0xf]
        %v270 = vld [vmem:[%s248 + $0x38] sm:$0xf]
        %v271 = vld [vmem:[%s248 + $0x3c] sm:$0xf]
        %v272 = vld [vmem:[%s1] sm:$0xf]
        %v273 = vld [vmem:[%s1 + $0x4] sm:$0xf]
        %v274 = vld [vmem:[%s1 + $0x8] sm:$0xf]
        %v275 = vld [vmem:[%s1 + $0xc] sm:$0xf]
        %v276 = vld [vmem:[%s1 + $0x10] sm:$0xf]
        %v277 = vld [vmem:[%s2] sm:$0x1]
        %v279 = vlaneseq
        %v280 = vshrl.u32 %v279, 7
        %v281 = vsub.s32 0, %v280
        %v282 = vrot.slane %v277, %v281
        %v300 = vunpack.c.l.b16 %v256
        %v301 = vunpack.c.l.b16 %v257
        %v302 = vunpack.c.l.b16 %v258
        %v303 = vunpack.c.l.b16 %v259
        %v304 = vunpack.c.l.b16 %v260
        %v305 = vunpack.c.l.b16 %v261
        %v306 = vunpack.c.l.b16 %v262
        %v307 = vunpack.c.l.b16 %v263
        %v308 = vunpack.c.l.b16 %v264
        %v309 = vunpack.c.l.b16 %v265
        %v310 = vunpack.c.l.b16 %v266
        %v311 = vunpack.c.l.b16 %v267
        %v312 = vunpack.c.l.b16 %v268
        %v313 = vunpack.c.l.b16 %v269
        %v314 = vunpack.c.l.b16 %v270
        %v315 = vunpack.c.l.b16 %v271
        %v316 = vpack.c.b16 %v301, %v300
        %v317 = vpack.c.b16 %v303, %v302
        %v318 = vpack.c.b16 %v305, %v304
        %v319 = vpack.c.b16 %v307, %v306
        %v320 = vpack.c.b16 %v309, %v308
        %v321 = vpack.c.b16 %v311, %v310
        %v322 = vpack.c.b16 %v313, %v312
        %v323 = vpack.c.b16 %v315, %v314
        %v329 = vunpack.c.l.b16 %v272
        %v330 = vunpack.c.l.b16 %v273
        %v331 = vunpack.c.l.b16 %v274
        %v332 = vunpack.c.l.b16 %v275
        %v333 = vunpack.c.l.b16 %v276
        %v334 = vpack.c.b16 %v330, %v329
        %v335 = vpack.c.b16 %v332, %v331
        %v336 = vpack.c.b16 %v333, %v333
        %vm339 = vcmask 326656
        %v341 = vsel %vm339, %v316, 0
        %v344 = vsel %vm339, %v317, 0
        %v347 = vsel %vm339, %v318, 0
        %v350 = vsel %vm339, %v319, 0
        %v353 = vsel %vm339, %v320, 0
        %v356 = vsel %vm339, %v321, 0
        %v359 = vsel %vm339, %v322, 0
        %v362 = vsel %vm339, %v323, 0
        %vm364 = vcmask 1043456
        %v366 = vsel %vm364, %v336, 0
        %368 = vmatprep.subr.bf16.mxu0 0
        %369 = vmatpush1.bf16.msra.mxu0 %v334
        %370 = vmatprep.subr.bf16.mxu0 0
        %371 = vmatpush1.bf16.msra.mxu0 %v335
        %372 = vmatprep.subr.bf16.mxu0 0
        %373 = vmatpush1.bf16.msra.mxu0 %v366
        %374 = vmatprep.subr.bf16.mxu0 0
        %375 = vmatpush1.bf16.msra.mxu0 0
        %376 = vmatprep.subr.bf16.mxu0 0
        %377 = vmatpush1.bf16.msra.mxu0 0
        %378 = vmatprep.subr.bf16.mxu0 0
        %379 = vmatpush1.bf16.msra.mxu0 0
        %380 = vmatprep.subr.bf16.mxu0 0
        %381 = vmatpush1.bf16.msra.mxu0 0
        %382 = vmatprep.subr.bf16.mxu0 0
        %383 = vmatpush1.bf16.msra.mxu0 0
        %384 = vmatprep.subr.bf16.mxu0 0
        %385 = vmatpush1.bf16.msra.mxu0 0
        %386 = vmatprep.subr.bf16.mxu0 0
        %387 = vmatpush1.bf16.msra.mxu0 0
        %388 = vmatprep.subr.bf16.mxu0 0
        %389 = vmatpush1.bf16.msra.mxu0 0
        %390 = vmatprep.subr.bf16.mxu0 0
        %391 = vmatpush1.bf16.msra.mxu0 0
        %392 = vmatprep.subr.bf16.mxu0 0
        %393 = vmatpush1.bf16.msra.mxu0 0
        %394 = vmatprep.subr.bf16.mxu0 0
        %395 = vmatpush1.bf16.msra.mxu0 0
        %396 = vmatprep.subr.bf16.mxu0 0
        %397 = vmatpush1.bf16.msra.mxu0 0
        %398 = vmatprep.subr.bf16.mxu0 0
        %399 = vmatpush1.bf16.msra.mxu0 0
        %400 = vmatprep.mubr.bf16.mxu0 0
        %401 = vmatmul.mubr.bf16.gmra.mrb[0].mxu0 %v341
        %v402 = vpop.f32.mrb[0].mxu0
        %v403 = vadd.f32 %v282, %v402
        %v404 = vpop.f32.mrb[0].mxu0
        %v405 = vpop.f32.mrb[0].mxu0
        %v406 = vadd.f32 %v282, %v405
        %v407 = vpop.f32.mrb[0].mxu0
        %408 = vmatprep.mubr.bf16.mxu0 0
        %409 = vmatmul.mubr.bf16.gmra.mrb[0].mxu0 %v344
        %v410 = vpop.f32.mrb[0].mxu0
        %v411 = vadd.f32 %v282, %v410
        %v412 = vpop.f32.mrb[0].mxu0
        %v413 = vpop.f32.mrb[0].mxu0
        %v414 = vadd.f32 %v282, %v413
        %v415 = vpop.f32.mrb[0].mxu0
        %416 = vmatprep.mubr.bf16.mxu0 0
        %417 = vmatmul.mubr.bf16.gmra.mrb[0].mxu0 %v347
        %v418 = vpop.f32.mrb[0].mxu0
        %v419 = vadd.f32 %v282, %v418
        %v420 = vpop.f32.mrb[0].mxu0
        %v421 = vpop.f32.mrb[0].mxu0
        %v422 = vadd.f32 %v282, %v421
        %v423 = vpop.f32.mrb[0].mxu0
        %424 = vmatprep.mubr.bf16.mxu0 0
        %425 = vmatmul.mubr.bf16.gmra.mrb[0].mxu0 %v350
        %v426 = vpop.f32.mrb[0].mxu0
        %v427 = vadd.f32 %v282, %v426
        %v428 = vpop.f32.mrb[0].mxu0
        %v429 = vpop.f32.mrb[0].mxu0
        %v430 = vadd.f32 %v282, %v429
        %v431 = vpop.f32.mrb[0].mxu0
        %432 = vmatprep.mubr.bf16.mxu0 0
        %433 = vmatmul.mubr.bf16.gmra.mrb[0].mxu0 %v353
        %v434 = vpop.f32.mrb[0].mxu0
        %v435 = vadd.f32 %v282, %v434
        %v436 = vpop.f32.mrb[0].mxu0
        %v437 = vpop.f32.mrb[0].mxu0
        %v438 = vadd.f32 %v282, %v437
        %v439 = vpop.f32.mrb[0].mxu0
        %440 = vmatprep.mubr.bf16.mxu0 0
        %441 = vmatmul.mubr.bf16.gmra.mrb[0].mxu0 %v356
        %v442 = vpop.f32.mrb[0].mxu0
        %v443 = vadd.f32 %v282, %v442
        %v444 = vpop.f32.mrb[0].mxu0
        %v445 = vpop.f32.mrb[0].mxu0
        %v446 = vadd.f32 %v282, %v445
        %v447 = vpop.f32.mrb[0].mxu0
        %448 = vmatprep.mubr.bf16.mxu0 0
        %449 = vmatmul.mubr.bf16.gmra.mrb[0].mxu0 %v359
        %v450 = vpop.f32.mrb[0].mxu0
        %v451 = vadd.f32 %v282, %v450
        %v452 = vpop.f32.mrb[0].mxu0
        %v453 = vpop.f32.mrb[0].mxu0
        %v454 = vadd.f32 %v282, %v453
        %v455 = vpop.f32.mrb[0].mxu0
        %456 = vmatprep.mubr.bf16.mxu0 0
        %457 = vmatmul.mubr.bf16.gmra.mrb[0].mxu0 %v362
        %v458 = vpop.f32.mrb[0].mxu0
        %v459 = vadd.f32 %v282, %v458
        %v460 = vpop.f32.mrb[0].mxu0
        %v461 = vpop.f32.mrb[0].mxu0
        %v462 = vadd.f32 %v282, %v461
        %v463 = vpop.f32.mrb[0].mxu0
        %464 = vdwg.mxu0
        %v465 = vmax.f32 %v403, 0.0
        %v466 = vmax.f32 %v406, 0.0
        %v467 = vmax.f32 %v411, 0.0
        %v468 = vmax.f32 %v414, 0.0
        %v469 = vmax.f32 %v419, 0.0
        %v470 = vmax.f32 %v422, 0.0
        %v471 = vmax.f32 %v427, 0.0
        %v472 = vmax.f32 %v430, 0.0
        %v473 = vmax.f32 %v435, 0.0
        %v474 = vmax.f32 %v438, 0.0
        %v475 = vmax.f32 %v443, 0.0
        %v476 = vmax.f32 %v446, 0.0
        %v477 = vmax.f32 %v451, 0.0
        %v478 = vmax.f32 %v454, 0.0
        %v479 = vmax.f32 %v459, 0.0
        %v480 = vmax.f32 %v462, 0.0
        %v481 = vld [vmem:[#allocation2] sm:$0x1]
        %v482 = vadd.f32 %v465, %v466
        %v483 = vadd.f32 %v482, %v467
        %v484 = vadd.f32 %v483, %v468
        %v485 = vadd.f32 %v484, %v469
        %v486 = vadd.f32 %v485, %v470
        %v487 = vadd.f32 %v486, %v471
        %v488 = vadd.f32 %v487, %v472
        %v489 = vadd.f32 %v488, %v473
        %v490 = vadd.f32 %v489, %v474
        %v491 = vadd.f32 %v490, %v475
        %v492 = vadd.f32 %v491, %v476
        %v493 = vadd.f32 %v492, %v477
        %v494 = vadd.f32 %v493, %v478
        %v495 = vadd.f32 %v494, %v479
        %v496 = vadd.f32 %v495, %v480
        %v497 = vrot.slane %v496, 4
        %v498 = vadd.f32 %v496, %v497
        %v499 = vrot.slane %v498, 2
        %v500 = vadd.f32 %v498, %v499
        %v501 = vrot.slane %v500, 1
        %v502 = vadd.f32 %v500, %v501
        %v503 = vadd.f32 %v481, %v502
        %504 = vst [vmem:[#allocation2] sm:$0x1] %v503
        %p505 = scmp.eq.s32.totalorder %s24, 1
        // Predicated region
        $region45: #{my_model_forward.1} parent=39 // pred_check
          %p506 = pneg %p505
        $region46: #{my_model_forward.1} parent=39 // pred_check_branch
          %508 = sbr.rel (%p506) target = $region48
        $region47: #{my_model_forward.1} parent=39 // pred_region
          %v509 = vld [vmem:[#allocation2] sm:$0x1]
          %v510 = vmul.f32 %v509, 0.00390625
          %v511 = vpack.c.bf16 %v510, %v510
          %v512 = vld [vmem:[%s3] sm:$0xf]
          %v513 = vld [vmem:[%s3 + $0x4] sm:$0xf]
          %v514 = vld [vmem:[%s3 + $0x8] sm:$0xf]
          %v515 = vld [vmem:[%s3 + $0xc] sm:$0xf]
          %v516 = vld [vmem:[%s3 + $0x10] sm:$0xf]
          %v517 = vld [vmem:[%s3 + $0x14] sm:$0xf]
          %v518 = vld [vmem:[%s3 + $0x18] sm:$0xf]
          %v519 = vld [vmem:[%s3 + $0x1c] sm:$0xf]
          %v520 = vld [vmem:[%s3 + $0x20] sm:$0xf]
          %v521 = vld [vmem:[%s3 + $0x24] sm:$0xf]
          %v522 = vld [vmem:[%s3 + $0x28] sm:$0xf]
          %v523 = vld [vmem:[%s3 + $0x2c] sm:$0xf]
          %v524 = vld [vmem:[%s3 + $0x30] sm:$0xf]
          %v525 = vld [vmem:[%s3 + $0x34] sm:$0xf]
          %v526 = vld [vmem:[%s3 + $0x38] sm:$0xf]
          %v527 = vld [vmem:[%s3 + $0x3c] sm:$0xf]
          %v528 = vld [vmem:[%s4] sm:$0x1]
          %v545 = vunpack.c.l.b16 %v512
          %v546 = vunpack.c.l.b16 %v513
          %v547 = vunpack.c.l.b16 %v514
          %v548 = vunpack.c.l.b16 %v515
          %v549 = vunpack.c.l.b16 %v516
          %v550 = vunpack.c.l.b16 %v517
          %v551 = vunpack.c.l.b16 %v518
          %v552 = vunpack.c.l.b16 %v519
          %v553 = vunpack.c.l.b16 %v520
          %v554 = vunpack.c.l.b16 %v521
          %v555 = vunpack.c.l.b16 %v522
          %v556 = vunpack.c.l.b16 %v523
          %v557 = vunpack.c.l.b16 %v524
          %v558 = vunpack.c.l.b16 %v525
          %v559 = vunpack.c.l.b16 %v526
          %v560 = vunpack.c.l.b16 %v527
          %v561 = vpack.c.b16 %v546, %v545
          %v562 = vpack.c.b16 %v548, %v547
          %v563 = vpack.c.b16 %v550, %v549
          %v564 = vpack.c.b16 %v552, %v551
          %v565 = vpack.c.b16 %v554, %v553
          %v566 = vpack.c.b16 %v556, %v555
          %v567 = vpack.c.b16 %v558, %v557
          %v568 = vpack.c.b16 %v560, %v559
          %577 = vmatprep.subr.bf16.mxu0 0
          %578 = vmatpush1.bf16.msra.mxu0 %v561
          %579 = vmatprep.subr.bf16.mxu0 0
          %580 = vmatpush1.bf16.msra.mxu0 %v562
          %581 = vmatprep.subr.bf16.mxu0 0
          %582 = vmatpush1.bf16.msra.mxu0 %v563
          %583 = vmatprep.subr.bf16.mxu0 0
          %584 = vmatpush1.bf16.msra.mxu0 %v564
          %585 = vmatprep.subr.bf16.mxu0 0
          %586 = vmatpush1.bf16.msra.mxu0 %v565
          %587 = vmatprep.subr.bf16.mxu0 0
          %588 = vmatpush1.bf16.msra.mxu0 %v566
          %589 = vmatprep.subr.bf16.mxu0 0
          %590 = vmatpush1.bf16.msra.mxu0 %v567
          %591 = vmatprep.subr.bf16.mxu0 0
          %592 = vmatpush1.bf16.msra.mxu0 %v568
          %593 = vmatprep.subr.bf16.mxu0 0
          %594 = vmatpush1.bf16.msra.mxu0 0
          %595 = vmatprep.subr.bf16.mxu0 0
          %596 = vmatpush1.bf16.msra.mxu0 0
          %597 = vmatprep.subr.bf16.mxu0 0
          %598 = vmatpush1.bf16.msra.mxu0 0
          %599 = vmatprep.subr.bf16.mxu0 0
          %600 = vmatpush1.bf16.msra.mxu0 0
          %601 = vmatprep.subr.bf16.mxu0 0
          %602 = vmatpush1.bf16.msra.mxu0 0
          %603 = vmatprep.subr.bf16.mxu0 0
          %604 = vmatpush1.bf16.msra.mxu0 0
          %605 = vmatprep.subr.bf16.mxu0 0
          %606 = vmatpush1.bf16.msra.mxu0 0
          %607 = vmatprep.subr.bf16.mxu0 0
          %608 = vmatpush1.bf16.msra.mxu0 0
          %609 = vmatprep.mubr.bf16.mxu0 0
          %610 = vmatmul.mubr.bf16.gmra.mrb[0].mxu0 %v511
          %v611 = vpop.f32.mrb[0].mxu0
          %v612 = vadd.f32 %v528, %v611
          %v613 = vpop.f32.mrb[0].mxu0
          %v614 = vpop.f32.mrb[0].mxu0
          %v615 = vpop.f32.mrb[0].mxu0
          %616 = vdwg.mxu0
          %617 = vst [vmem:[%s239] sm:$0x1] %v612
        $region48: #{my_model_forward.1} parent=39 // pred_fallthru
          _
        %s618 = sand.u32 %s151, 1
        %s619 = scalar_lea.sflag [#allocation4], %s618
        %s620 = sand.u32 %s151, 1
        %s621 = scalar_lea.vmem [#allocation3], %s620
        // Predicated region
        $region49: #{my_model_forward.1} parent=39 // pred_check
          %p622 = pneg %p161
        $region50: #{my_model_forward.1} parent=39 // pred_check_branch
          %624 = sbr.rel (%p622) target = $region52
        $region51: #{my_model_forward.1} parent=39 // pred_region
          %s626 = ssub.s32 16, 16
          %627 = vsyncadd %s619, %s626
          %s628 = smul.addr %s23, 16
          %s629 = scalar_lea.hbm %s5, %s628
          %s631 = sshll.u32 %s621, 4
          %s632 = int_to_ptr.vmem [resolvable:$true] %s631
          %634 = dma.vmem_to_hbm [thread:$0]  %s632, 16, %s629, %s619
        $region52: #{my_model_forward.1} parent=39 // pred_fallthru
          _
      $region40: #{my_model_forward.1} parent=5 // pred_fallthru
        _
      %p635 = scmp.le.s32.totalorder 2, %s14
      // Predicated region
      $region53: #{my_model_forward.1} parent=5 // pred_check
        %p636 = pneg %p635
      $region54: #{my_model_forward.1} parent=5 // pred_check_branch
        %638 = sbr.rel (%p636) target = $region56
      $region55: #{my_model_forward.1} parent=5 // pred_region
        %s639 = ssub.s32 %s14, 2
        // Predicated region
        $region57: #{my_model_forward.1} parent=55 // pred_check
          %p640 = pneg %p167
        $region58: #{my_model_forward.1} parent=55 // pred_check_branch
          %642 = sbr.rel (%p640) target = $region60
        $region59: #{my_model_forward.1} parent=55 // pred_region
          %s643 = sand.u32 %s152, 1
          %s644 = scalar_lea.sflag [#allocation4], %s643
          %s645 = sand.u32 %s152, 1
          %s646 = scalar_lea.vmem [#allocation3], %s645
          %647 = dma.done %s644, 16
        $region60: #{my_model_forward.1} parent=55 // pred_fallthru
          _
      $region56: #{my_model_forward.1} parent=5 // pred_fallthru
        _
    $region6: #{my_model_forward.1} parent=1 // loop_footer
      %s18 = sadd.s32 1, %s14
    $region7: #{my_model_forward.1} parent=1 // loop_footer_branch
      %13 = sbr.rel target = $region3
    $region8: #{my_model_forward.1} parent=1 // loop_exit
      _
    %648 = vsyncpa [#allocation4], 1
    %s649 = scalar_lea.sflag [#allocation4], 1
    %650 = vsyncpa %s649, 1

</llo_original>
